<compile_context>
chip_gen: v7x
topology: tpu7x:2x2x1
jax: 0.10.0
libtpu: 0.0.40
codegen_flags: <defaults>
</compile_context>

<pallas_src>
import functools
import math

import jax
import jax.numpy as jnp
from jax.experimental import pallas as pl
from jax.experimental.pallas import tpu as pltpu


_VMEM_LIMIT = 48 * 1024 * 1024        # below v7x's 64 MiB physical VMEM
_RESIDENT_BUDGET = 40 * 1024 * 1024   # headroom under the scoped limit


def _round_up(x, m):
    return ((x + m - 1) // m) * m


def _pick_tile(dim, candidates, max_tile=None):
    """Largest candidate (<= max_tile) that evenly divides dim (dim % 128 == 0)."""
    for c in candidates:
        if max_tile is not None and c > max_tile:
            continue
        if dim >= c and dim % c == 0:
            return c
    return dim


def _pad2d(x, rows, cols):
    r, c = x.shape
    if r == rows and c == cols:
        return x
    return jnp.pad(x, ((0, rows - r), (0, cols - c)))


# ----------------------------------------------------------------------------
# Generic tiled matmul (stage 1, and stage-2 fallback when the support slab is
# too large to keep resident).  Grid = (M tiles, N tiles, K tiles), K last.
# ----------------------------------------------------------------------------
def _matmul_kernel(a_ref, b_ref, o_ref, acc_ref, *, apply_relu):
    @pl.when(pl.program_id(2) == 0)
    def _():
        acc_ref[...] = jnp.zeros_like(acc_ref)

    # Operands cast to bf16 on the VPU (no-op if already bf16); f32 MXU acc.
    a = a_ref[...].astype(jnp.bfloat16)
    b = b_ref[...].astype(jnp.bfloat16)
    acc_ref[...] += jnp.dot(a, b, preferred_element_type=jnp.float32)

    @pl.when(pl.program_id(2) == pl.num_programs(2) - 1)
    def _():
        out = acc_ref[...]
        if apply_relu:
            out = jnp.maximum(out, 0.0)
        o_ref[...] = out.astype(o_ref.dtype)


def _tiled_matmul(a, b, *, tm, tn, tk, apply_relu=False, out_dtype=jnp.float32):
    m, k = a.shape
    k2, n = b.shape
    assert k == k2 and m % tm == 0 and n % tn == 0 and k % tk == 0

    kernel = functools.partial(_matmul_kernel, apply_relu=apply_relu)
    return pl.pallas_call(
        kernel,
        out_shape=jax.ShapeDtypeStruct((m, n), out_dtype),
        grid_spec=pltpu.PrefetchScalarGridSpec(
            num_scalar_prefetch=0,
            grid=(m // tm, n // tn, k // tk),
            in_specs=[
                pl.BlockSpec((tm, tk), lambda i, j, kk: (i, kk)),
                pl.BlockSpec((tk, tn), lambda i, j, kk: (kk, j)),
            ],
            out_specs=pl.BlockSpec((tm, tn), lambda i, j, kk: (i, j)),
            scratch_shapes=[pltpu.VMEM((tm, tn), jnp.float32)],
        ),
        compiler_params=pltpu.CompilerParams(
            dimension_semantics=("parallel", "parallel", "arbitrary"),
            vmem_limit_bytes=_VMEM_LIMIT,
        ),
    )(a, b)


# ----------------------------------------------------------------------------
# Stage 2 preferred path: adj @ support with the whole support slab resident
# in VMEM and the full padded F_out as the output width.  Grid = (M tiles,
# K tiles); adj tiles stream from HBM exactly once.
# ----------------------------------------------------------------------------
def _adj_spmm_resident_kernel(adj_ref, sup_ref, o_ref, acc_ref, *, tk, apply_relu):
    kk = pl.program_id(1)

    @pl.when(kk == 0)
    def _():
        acc_ref[...] = jnp.zeros_like(acc_ref)

    start = pl.multiple_of(kk * tk, tk)
    a = adj_ref[...].astype(jnp.bfloat16)          # f32 adj tile -> bf16 in-kernel
    b = sup_ref[pl.ds(start, tk), :]               # bf16 slice of resident support
    acc_ref[...] += jnp.dot(a, b, preferred_element_type=jnp.float32)

    @pl.when(kk == pl.num_programs(1) - 1)
    def _():
        out = acc_ref[...]
        if apply_relu:
            out = jnp.maximum(out, 0.0)
        o_ref[...] = out.astype(o_ref.dtype)


def _adj_spmm_resident(adj, support, *, tm, tk, apply_relu, out_dtype=jnp.float32):
    n_rows, n_cols = adj.shape
    k2, fp = support.shape
    assert n_cols == k2 and n_rows % tm == 0 and n_cols % tk == 0

    kernel = functools.partial(_adj_spmm_resident_kernel, tk=tk,
                               apply_relu=apply_relu)
    return pl.pallas_call(
        kernel,
        out_shape=jax.ShapeDtypeStruct((n_rows, fp), out_dtype),
        grid_spec=pltpu.PrefetchScalarGridSpec(
            num_scalar_prefetch=0,
            grid=(n_rows // tm, n_cols // tk),
            in_specs=[
                pl.BlockSpec((tm, tk), lambda i, kk: (i, kk)),
                # Constant block index -> the whole padded support stays
                # resident in VMEM, DMA'd once for the entire grid.
                pl.BlockSpec((k2, fp), lambda i, kk: (0, 0)),
            ],
            out_specs=pl.BlockSpec((tm, fp), lambda i, kk: (i, 0)),
            scratch_shapes=[pltpu.VMEM((tm, fp), jnp.float32)],
        ),
        compiler_params=pltpu.CompilerParams(
            dimension_semantics=("parallel", "arbitrary"),
            vmem_limit_bytes=_VMEM_LIMIT,
        ),
    )(adj, support)


# ----------------------------------------------------------------------------
# GNNLayer.forward
# ----------------------------------------------------------------------------
def gnn_layer(features, adj, weight, active=True):
    """Pallas implementation of GNNLayer.forward (dense adj)."""
    n, f_in = features.shape
    f_in_w, f_out = weight.shape
    assert f_in == f_in_w
    assert adj.shape == (n, n)

    # Lane-dense padding.  At realistic sizes N is padded to a multiple of 256
    # so M tiles fill the 256-wide MXU (v6e/v7x); small shapes keep 128 to
    # avoid inflating adj traffic with padding.
    n_align = 256 if n >= 1024 else 128
    np_pad = _round_up(n, n_align)
    kp = _round_up(f_in, 128)
    fp = _round_up(f_out, 128)

    # Inputs stay f32 (no separate wrapper-side bf16 cast pass over the N x N
    # adjacency); tiles are cast to bf16 inside the kernels.
    # TODO(synk): when N is not tile-aligned the jnp.pad over adj is still a
    # full N^2 pass; in-kernel remainder masking would remove it.
    feat_p = _pad2d(features.astype(jnp.float32), np_pad, kp)
    w_p = _pad2d(weight.astype(jnp.float32), kp, fp)
    adj_p = _pad2d(adj.astype(jnp.float32), np_pad, np_pad)

    # Tiles: biggest aligned tile that still leaves >= 2 row blocks so both
    # v7x TensorCores get work along the "parallel" i axis.
    tm = _pick_tile(np_pad, (512, 256, 128), max_tile=max(128, np_pad // 2))
    tn1 = _pick_tile(fp, (512, 256, 128))
    tk1 = _pick_tile(kp, (1024, 512, 256, 128))
    tk2 = _pick_tile(np_pad, (2048, 1024, 512, 256, 128))

    # Stage 1: support = features @ weight (computed once, stored bf16).
    support = _tiled_matmul(feat_p, w_p, tm=tm, tn=tn1, tk=tk1,
                            apply_relu=False, out_dtype=jnp.bfloat16)

    # Stage 2: output = relu(adj @ support).  Preferred path streams adj from
    # HBM exactly once with the support slab resident in VMEM.
    vmem_need = (2 * np_pad * fp * 2          # double-buffered support slab (bf16)
                 + 2 * tm * tk2 * 4           # double-buffered adj tiles (f32)
                 + 2 * tm * fp * 4            # double-buffered output tiles (f32)
                 + tm * fp * 4)               # f32 accumulator
    if vmem_need <= _RESIDENT_BUDGET:
        out = _adj_spmm_resident(adj_p, support, tm=tm, tk=tk2,
                                 apply_relu=active, out_dtype=jnp.float32)
    else:
        # Fallback when N * F_out_pad is too large to keep resident (v7x 64 MiB).
        tn2 = _pick_tile(fp, (512, 256, 128))
        out = _tiled_matmul(adj_p, support, tm=tm, tn=tn2, tk=tk2,
                            apply_relu=active, out_dtype=jnp.float32)

    return out[:n, :f_out]


def xavier_uniform(key, in_features, out_features, dtype=jnp.float32):
    # torch.nn.init.xavier_uniform_: U(-a, a), a = sqrt(6 / (fan_in + fan_out))
    bound = math.sqrt(6.0 / (in_features + out_features))
    return jax.random.uniform(key, (in_features, out_features),
                              dtype=dtype, minval=-bound, maxval=bound)


def _reference(features, adj, weight, active=True):
    # Replays the kernel's bf16-operand / f32-accumulate path.
    f32 = jnp.float32
    f_b = features.astype(jnp.bfloat16).astype(f32)
    w_b = weight.astype(jnp.bfloat16).astype(f32)
    a_b = adj.astype(jnp.bfloat16).astype(f32)
    s_b = (f_b @ w_b).astype(jnp.bfloat16).astype(f32)
    o = a_b @ s_b
    return jnp.maximum(o, 0.0) if active else o


if __name__ == "__main__":
    def run_case(n, f_in, f_out, key):
        k_feat, k_adj, k_w = jax.random.split(key, 3)

        features = jax.random.normal(k_feat, (n, f_in), dtype=jnp.float32)

        # Deterministic row-normalized dense adjacency with self-loops
        # (stand-in for torch.spmm's sparse adj; identical dense semantics).
        adj_raw = (jax.random.uniform(k_adj, (n, n)) > 0.7).astype(jnp.float32)
        adj_raw = adj_raw + jnp.eye(n, dtype=jnp.float32)
        adj = adj_raw / jnp.sum(adj_raw, axis=1, keepdims=True)

        weight = xavier_uniform(k_w, f_in, f_out)

        out = jax.block_until_ready(gnn_layer(features, adj, weight, active=True))

        ref = _reference(features, adj, weight, active=True)
        assert out.shape == (n, f_out)
        assert jnp.allclose(out, ref, atol=1e-2, rtol=1e-2), (
            f"mismatch vs reference for shapes N={n}, F_in={f_in}, F_out={f_out}")

    # Small, module-consistent shape (single grid tile after padding).
    run_case(16, 32, 8, jax.random.PRNGKey(0))
    # Multi-tile shape: exercises row tiling, K accumulation, padding, and the
    # resident-support stage-2 path.
    run_case(384, 200, 160, jax.random.PRNGKey(1))

    print("KERNEL_OK")
</pallas_src>

<mosaic_0001>
module attributes {stable_mosaic.version = 11 : i64} {
  func.func @_matmul_kernel(%arg0: i32, %arg1: i32, %arg2: i32, %arg3: memref<128x128xf32, #tpu.memory_space<vmem>>, %arg4: memref<128x128xf32, #tpu.memory_space<vmem>>, %arg5: memref<128x128xbf16, #tpu.memory_space<vmem>>, %arg6: memref<128x128xf32, #tpu.memory_space<vmem>>) attributes {dimension_semantics = [#tpu.dimension_semantics<parallel>, #tpu.dimension_semantics<parallel>, #tpu.dimension_semantics<arbitrary>], iteration_bounds = array<i64: 1, 1, 1>, scalar_prefetch = 0 : i64, scratch_operands = 1 : i64, tpu.core_type = #tpu.core_type<tc>, window_params = [{transform_indices = @transform_0, window_bounds = array<i64: 128, 128>}, {transform_indices = @transform_1, window_bounds = array<i64: 128, 128>}, {transform_indices = @transform_2, window_bounds = array<i64: 128, 128>}]} {
    %c0_i32 = arith.constant 0 : i32
    %0 = arith.cmpi eq, %arg2, %c0_i32 : i32
    %1 = arith.extui %0 : i1 to i32
    %c0_i32_0 = arith.constant 0 : i32
    %2 = arith.cmpi ne, %1, %c0_i32_0 : i32
    scf.if %2 {
      %cst_10 = arith.constant 0.000000e+00 : f32
      %14 = vector.broadcast %cst_10 : f32 to vector<128x128xf32>
      %c0_11 = arith.constant 0 : index
      %c0_12 = arith.constant 0 : index
      %15 = vector.load %arg6[%c0_11, %c0_12] : memref<128x128xf32, #tpu.memory_space<vmem>>, vector<128x128xf32>
      tpu.vector_store %arg6[%c0_11, %c0_12], %14 {strides = array<i32>} : memref<128x128xf32, #tpu.memory_space<vmem>>, vector<128x128xf32>,
    } else {
    }
    %c0 = arith.constant 0 : index
    %c0_1 = arith.constant 0 : index
    %3 = vector.load %arg3[%c0, %c0_1] : memref<128x128xf32, #tpu.memory_space<vmem>>, vector<128x128xf32>
    %4 = arith.truncf %3 : vector<128x128xf32> to vector<128x128xbf16>
    %c0_2 = arith.constant 0 : index
    %c0_3 = arith.constant 0 : index
    %5 = vector.load %arg4[%c0_2, %c0_3] : memref<128x128xf32, #tpu.memory_space<vmem>>, vector<128x128xf32>
    %6 = arith.truncf %5 : vector<128x128xf32> to vector<128x128xbf16>
    %c0_4 = arith.constant 0 : index
    %c0_5 = arith.constant 0 : index
    %7 = vector.load %arg6[%c0_4, %c0_5] : memref<128x128xf32, #tpu.memory_space<vmem>>, vector<128x128xf32>
    %cst = arith.constant dense<0.000000e+00> : vector<128x128xf32>
    %8 = tpu.matmul %4, %6, %cst {dimension_numbers = #tpu.dot_dimension_numbers<[1], [0], [0], [1], [0, 0, 1, 1], [], []>} : vector<128x128xbf16>, vector<128x128xbf16>, vector<128x128xf32> -> vector<128x128xf32>
    %9 = arith.addf %7, %8 : vector<128x128xf32>
    %c0_6 = arith.constant 0 : index
    %c0_7 = arith.constant 0 : index
    %10 = vector.load %arg6[%c0_6, %c0_7] : memref<128x128xf32, #tpu.memory_space<vmem>>, vector<128x128xf32>
    tpu.vector_store %arg6[%c0_6, %c0_7], %9 {strides = array<i32>} : memref<128x128xf32, #tpu.memory_space<vmem>>, vector<128x128xf32>,
    %c0_i32_8 = arith.constant 0 : i32
    %11 = arith.cmpi eq, %arg2, %c0_i32_8 : i32
    %12 = arith.extui %11 : i1 to i32
    %c0_i32_9 = arith.constant 0 : i32
    %13 = arith.cmpi ne, %12, %c0_i32_9 : i32
    scf.if %13 {
      %c0_10 = arith.constant 0 : index
      %c0_11 = arith.constant 0 : index
      %14 = vector.load %arg6[%c0_10, %c0_11] : memref<128x128xf32, #tpu.memory_space<vmem>>, vector<128x128xf32>
      %15 = arith.truncf %14 : vector<128x128xf32> to vector<128x128xbf16>
      %c0_12 = arith.constant 0 : index
      %c0_13 = arith.constant 0 : index
      %16 = vector.load %arg5[%c0_12, %c0_13] : memref<128x128xbf16, #tpu.memory_space<vmem>>, vector<128x128xbf16>
      tpu.vector_store %arg5[%c0_12, %c0_13], %15 {strides = array<i32>} : memref<128x128xbf16, #tpu.memory_space<vmem>>, vector<128x128xbf16>,
    } else {
    }
    return
  }
  func.func @transform_0(%arg0: i32, %arg1: i32, %arg2: i32) -> (i32, i32) {
    %c0_i32 = arith.constant 0 : i32
    return %arg0, %arg2 : i32, i32
  }
  func.func @transform_1(%arg0: i32, %arg1: i32, %arg2: i32) -> (i32, i32) {
    %c0_i32 = arith.constant 0 : i32
    return %arg2, %arg1 : i32, i32
  }
  func.func @transform_2(%arg0: i32, %arg1: i32, %arg2: i32) -> (i32, i32) {
    %c0_i32 = arith.constant 0 : i32
    return %arg0, %arg1 : i32, i32
  }
}

</mosaic_0001>

<llo_original>
// kernel: tpu_custom_call.1
$region0: #{tpu_custom_call.1}
  #allocation0 [shape = 'u32[]', space=smem, size = 0x4, offset = 0x4, fixed_abs, tag = 'smem constant byte address 0x4 - core index']
  #allocation1 [shape = 'u32[144,128]{1,0:T(1,128)}', space=vmem, size = 0x12000, scoped, tag = 'internal scratch']
  #allocation2 [shape = 'f32[128,128]{1,0:T(8,128)}', space=vmem, size = 0x10000, scoped, tag = 'scratch operand']
  %s0 = inlined_call_operand.hbm [shape: f32[128,128], index: 0, kind: input, shape index: {}]
  %s1 = inlined_call_operand.hbm [shape: f32[128,128], index: 1, kind: input, shape index: {}]
  %s2 = inlined_call_operand.hbm [shape: bf16[128,128], index: 2, kind: output, shape index: {}]
  %s3 = sld [smem:[#allocation0]]
  $region34: #{tpu_custom_call.1} parent=0
    _
  %s5 = ssub.s32 1, %s3
  %s6 = scalar_select 0, %s5, %s3
  $region1: #{tpu_custom_call.1} parent=0
    #allocation3 [shape = 'u8[65536]{0}', space=vmem, size = 0x10000, scoped, tag = 'input window, operand 0, single buffered']
    #allocation4 [shape = 's32[1]{0}', space=sflag, size = 0x4, scoped, tag = 'scoped memory for tpu_custom_call.1']
    #allocation5 [shape = 's32[1]{0}', space=sflag, size = 0x4, scoped, tag = 'scoped memory for tpu_custom_call.1']
    #allocation6 [shape = 'u8[65536]{0}', space=vmem, size = 0x10000, scoped, tag = 'input window, operand 1, single buffered']
    #allocation7 [shape = 's32[1]{0}', space=sflag, size = 0x4, scoped, tag = 'scoped memory for tpu_custom_call.1']
    #allocation8 [shape = 'u8[32768]{0}', space=vmem, size = 0x8000, scoped, tag = 'output window, operand 0, single buffered']
    %7 = vsyncpa [#allocation4], 0
    %8 = vsyncpa [#allocation7], 0
    %9 = vsyncpa [#allocation5], 0
    // Predicated region
    $region2: #{tpu_custom_call.1} parent=1 // pred_check
      _
    $region3: #{tpu_custom_call.1} parent=1 // pred_check_branch
      %11 = sbr.rel (0) target = $region5
    $region4: #{tpu_custom_call.1} parent=1 // pred_region
      %s13 = ssub.s32 2048, 2048
      %14 = vsyncadd [#allocation4], %s13
      %s15 = sshll.u32 [#allocation3], 4
      %s16 = int_to_ptr.vmem [resolvable:$true] %s15
      %21 = dma.hbm_to_vmem [thread:$0]  %s0, 2048, %s16, [#allocation4], 128, 128, 8
    $region5: #{tpu_custom_call.1} parent=1 // pred_fallthru
      _
    // Predicated region
    $region6: #{tpu_custom_call.1} parent=1 // pred_check
      _
    $region7: #{tpu_custom_call.1} parent=1 // pred_check_branch
      %23 = sbr.rel (0) target = $region9
    $region8: #{tpu_custom_call.1} parent=1 // pred_region
      %s25 = ssub.s32 2048, 2048
      %26 = vsyncadd [#allocation7], %s25
      %s27 = sshll.u32 [#allocation6], 4
      %s28 = int_to_ptr.vmem [resolvable:$true] %s27
      %33 = dma.hbm_to_vmem [thread:$0]  %s1, 2048, %s28, [#allocation7], 128, 128, 8
    $region9: #{tpu_custom_call.1} parent=1 // pred_fallthru
      _
    // Predicated region
    $region10: #{tpu_custom_call.1} parent=1 // pred_check
      _
    $region11: #{tpu_custom_call.1} parent=1 // pred_check_branch
      %35 = sbr.rel (0) target = $region13
    $region12: #{tpu_custom_call.1} parent=1 // pred_region
      %36 = dma.done [#allocation4], 2048
    $region13: #{tpu_custom_call.1} parent=1 // pred_fallthru
      _
    // Predicated region
    $region14: #{tpu_custom_call.1} parent=1 // pred_check
      _
    $region15: #{tpu_custom_call.1} parent=1 // pred_check_branch
      %38 = sbr.rel (0) target = $region17
    $region16: #{tpu_custom_call.1} parent=1 // pred_region
      %39 = dma.done [#allocation7], 2048
    $region17: #{tpu_custom_call.1} parent=1 // pred_fallthru
      _
    %p41 = scmp.eq.s32.totalorder 0, 0
    // Predicated region
    $region18: #{tpu_custom_call.1} parent=1 // pred_check
      %p42 = pneg %p41
    $region19: #{tpu_custom_call.1} parent=1 // pred_check_branch
      %44 = sbr.rel (%p42) target = $region21
    $region20: #{tpu_custom_call.1} parent=1 // pred_region
      %45 = vst [vmem:[#allocation2] sm:$0xff] 0.0
      %46 = vst [vmem:[#allocation2 + $0x8] sm:$0xff] 0.0
      %47 = vst [vmem:[#allocation2 + $0x10] sm:$0xff] 0.0
      %48 = vst [vmem:[#allocation2 + $0x18] sm:$0xff] 0.0
      %49 = vst [vmem:[#allocation2 + $0x20] sm:$0xff] 0.0
      %50 = vst [vmem:[#allocation2 + $0x28] sm:$0xff] 0.0
      %51 = vst [vmem:[#allocation2 + $0x30] sm:$0xff] 0.0
      %52 = vst [vmem:[#allocation2 + $0x38] sm:$0xff] 0.0
      %53 = vst [vmem:[#allocation2 + $0x40] sm:$0xff] 0.0
      %54 = vst [vmem:[#allocation2 + $0x48] sm:$0xff] 0.0
      %55 = vst [vmem:[#allocation2 + $0x50] sm:$0xff] 0.0
      %56 = vst [vmem:[#allocation2 + $0x58] sm:$0xff] 0.0
      %57 = vst [vmem:[#allocation2 + $0x60] sm:$0xff] 0.0
      %58 = vst [vmem:[#allocation2 + $0x68] sm:$0xff] 0.0
      %59 = vst [vmem:[#allocation2 + $0x70] sm:$0xff] 0.0
      %60 = vst [vmem:[#allocation2 + $0x78] sm:$0xff] 0.0
    $region21: #{tpu_custom_call.1} parent=1 // pred_fallthru
      _
    %v61 = vld [vmem:[#allocation3] sm:$0xff]
    %v62 = vld [vmem:[#allocation3 + $0x8] sm:$0xff]
    %v63 = vld [vmem:[#allocation3 + $0x10] sm:$0xff]
    %v64 = vld [vmem:[#allocation3 + $0x18] sm:$0xff]
    %v65 = vld [vmem:[#allocation3 + $0x20] sm:$0xff]
    %v66 = vld [vmem:[#allocation3 + $0x28] sm:$0xff]
    %v67 = vld [vmem:[#allocation3 + $0x30] sm:$0xff]
    %v68 = vld [vmem:[#allocation3 + $0x38] sm:$0xff]
    %v69 = vld [vmem:[#allocation3 + $0x40] sm:$0xff]
    %v70 = vld [vmem:[#allocation3 + $0x48] sm:$0xff]
    %v71 = vld [vmem:[#allocation3 + $0x50] sm:$0xff]
    %v72 = vld [vmem:[#allocation3 + $0x58] sm:$0xff]
    %v73 = vld [vmem:[#allocation3 + $0x60] sm:$0xff]
    %v74 = vld [vmem:[#allocation3 + $0x68] sm:$0xff]
    %v75 = vld [vmem:[#allocation3 + $0x70] sm:$0xff]
    %v76 = vld [vmem:[#allocation3 + $0x78] sm:$0xff]
    %v77 = vpack.c.bf16 %v62, %v61
    %v78 = vpack.c.bf16 %v64, %v63
    %v79 = vpack.c.bf16 %v66, %v65
    %v80 = vpack.c.bf16 %v68, %v67
    %v81 = vpack.c.bf16 %v70, %v69
    %v82 = vpack.c.bf16 %v72, %v71
    %v83 = vpack.c.bf16 %v74, %v73
    %v84 = vpack.c.bf16 %v76, %v75
    %v85 = vld [vmem:[#allocation6] sm:$0xff]
    %v86 = vld [vmem:[#allocation6 + $0x8] sm:$0xff]
    %v87 = vld [vmem:[#allocation6 + $0x10] sm:$0xff]
    %v88 = vld [vmem:[#allocation6 + $0x18] sm:$0xff]
    %v89 = vld [vmem:[#allocation6 + $0x20] sm:$0xff]
    %v90 = vld [vmem:[#allocation6 + $0x28] sm:$0xff]
    %v91 = vld [vmem:[#allocation6 + $0x30] sm:$0xff]
    %v92 = vld [vmem:[#allocation6 + $0x38] sm:$0xff]
    %v93 = vld [vmem:[#allocation6 + $0x40] sm:$0xff]
    %v94 = vld [vmem:[#allocation6 + $0x48] sm:$0xff]
    %v95 = vld [vmem:[#allocation6 + $0x50] sm:$0xff]
    %v96 = vld [vmem:[#allocation6 + $0x58] sm:$0xff]
    %v97 = vld [vmem:[#allocation6 + $0x60] sm:$0xff]
    %v98 = vld [vmem:[#allocation6 + $0x68] sm:$0xff]
    %v99 = vld [vmem:[#allocation6 + $0x70] sm:$0xff]
    %v100 = vld [vmem:[#allocation6 + $0x78] sm:$0xff]
    %v101 = vpack.c.bf16 %v86, %v85
    %v102 = vpack.c.bf16 %v88, %v87
    %v103 = vpack.c.bf16 %v90, %v89
    %v104 = vpack.c.bf16 %v92, %v91
    %v105 = vpack.c.bf16 %v94, %v93
    %v106 = vpack.c.bf16 %v96, %v95
    %v107 = vpack.c.bf16 %v98, %v97
    %v108 = vpack.c.bf16 %v100, %v99
    %v109 = vld [vmem:[#allocation2] sm:$0xff]
    %v110 = vld [vmem:[#allocation2 + $0x8] sm:$0xff]
    %v111 = vld [vmem:[#allocation2 + $0x10] sm:$0xff]
    %v112 = vld [vmem:[#allocation2 + $0x18] sm:$0xff]
    %v113 = vld [vmem:[#allocation2 + $0x20] sm:$0xff]
    %v114 = vld [vmem:[#allocation2 + $0x28] sm:$0xff]
    %v115 = vld [vmem:[#allocation2 + $0x30] sm:$0xff]
    %v116 = vld [vmem:[#allocation2 + $0x38] sm:$0xff]
    %v117 = vld [vmem:[#allocation2 + $0x40] sm:$0xff]
    %v118 = vld [vmem:[#allocation2 + $0x48] sm:$0xff]
    %v119 = vld [vmem:[#allocation2 + $0x50] sm:$0xff]
    %v120 = vld [vmem:[#allocation2 + $0x58] sm:$0xff]
    %v121 = vld [vmem:[#allocation2 + $0x60] sm:$0xff]
    %v122 = vld [vmem:[#allocation2 + $0x68] sm:$0xff]
    %v123 = vld [vmem:[#allocation2 + $0x70] sm:$0xff]
    %v124 = vld [vmem:[#allocation2 + $0x78] sm:$0xff]
    %125 = vmatprep.subr.bf16.mxu0 0
    %126 = vmatpush1.bf16.msra.mxu0 %v101
    %127 = vmatprep.subr.bf16.mxu0 0
    %128 = vmatpush1.bf16.msra.mxu0 %v102
    %129 = vmatprep.subr.bf16.mxu0 0
    %130 = vmatpush1.bf16.msra.mxu0 %v103
    %131 = vmatprep.subr.bf16.mxu0 0
    %132 = vmatpush1.bf16.msra.mxu0 %v104
    %133 = vmatprep.subr.bf16.mxu0 0
    %134 = vmatpush1.bf16.msra.mxu0 %v105
    %135 = vmatprep.subr.bf16.mxu0 0
    %136 = vmatpush1.bf16.msra.mxu0 %v106
    %137 = vmatprep.subr.bf16.mxu0 0
    %138 = vmatpush1.bf16.msra.mxu0 %v107
    %139 = vmatprep.subr.bf16.mxu0 0
    %140 = vmatpush1.bf16.msra.mxu0 %v108
    %141 = vmatprep.subr.bf16.mxu0 0
    %142 = vmatpush1.bf16.msra.mxu0 0
    %143 = vmatprep.subr.bf16.mxu0 0
    %144 = vmatpush1.bf16.msra.mxu0 0
    %145 = vmatprep.subr.bf16.mxu0 0
    %146 = vmatpush1.bf16.msra.mxu0 0
    %147 = vmatprep.subr.bf16.mxu0 0
    %148 = vmatpush1.bf16.msra.mxu0 0
    %149 = vmatprep.subr.bf16.mxu0 0
    %150 = vmatpush1.bf16.msra.mxu0 0
    %151 = vmatprep.subr.bf16.mxu0 0
    %152 = vmatpush1.bf16.msra.mxu0 0
    %153 = vmatprep.subr.bf16.mxu0 0
    %154 = vmatpush1.bf16.msra.mxu0 0
    %155 = vmatprep.subr.bf16.mxu0 0
    %156 = vmatpush1.bf16.msra.mxu0 0
    %157 = vmatprep.mubr.bf16.mxu0 0
    %158 = vmatmul.mubr.bf16.gmra.mrb[0].mxu0 %v77
    %v159 = vpop.f32.mrb[0].mxu0
    %v160 = vadd.f32 0.0, %v159
    %v161 = vpop.f32.mrb[0].mxu0
    %v162 = vpop.f32.mrb[0].mxu0
    %v163 = vadd.f32 0.0, %v162
    %v164 = vpop.f32.mrb[0].mxu0
    %165 = vmatprep.mubr.bf16.mxu0 0
    %166 = vmatmul.mubr.bf16.gmra.mrb[0].mxu0 %v78
    %v167 = vpop.f32.mrb[0].mxu0
    %v168 = vadd.f32 0.0, %v167
    %v169 = vpop.f32.mrb[0].mxu0
    %v170 = vpop.f32.mrb[0].mxu0
    %v171 = vadd.f32 0.0, %v170
    %v172 = vpop.f32.mrb[0].mxu0
    %173 = vmatprep.mubr.bf16.mxu0 0
    %174 = vmatmul.mubr.bf16.gmra.mrb[0].mxu0 %v79
    %v175 = vpop.f32.mrb[0].mxu0
    %v176 = vadd.f32 0.0, %v175
    %v177 = vpop.f32.mrb[0].mxu0
    %v178 = vpop.f32.mrb[0].mxu0
    %v179 = vadd.f32 0.0, %v178
    %v180 = vpop.f32.mrb[0].mxu0
    %181 = vmatprep.mubr.bf16.mxu0 0
    %182 = vmatmul.mubr.bf16.gmra.mrb[0].mxu0 %v80
    %v183 = vpop.f32.mrb[0].mxu0
    %v184 = vadd.f32 0.0, %v183
    %v185 = vpop.f32.mrb[0].mxu0
    %v186 = vpop.f32.mrb[0].mxu0
    %v187 = vadd.f32 0.0, %v186
    %v188 = vpop.f32.mrb[0].mxu0
    %189 = vmatprep.mubr.bf16.mxu0 0
    %190 = vmatmul.mubr.bf16.gmra.mrb[0].mxu0 %v81
    %v191 = vpop.f32.mrb[0].mxu0
    %v192 = vadd.f32 0.0, %v191
    %v193 = vpop.f32.mrb[0].mxu0
    %v194 = vpop.f32.mrb[0].mxu0
    %v195 = vadd.f32 0.0, %v194
    %v196 = vpop.f32.mrb[0].mxu0
    %197 = vmatprep.mubr.bf16.mxu0 0
    %198 = vmatmul.mubr.bf16.gmra.mrb[0].mxu0 %v82
    %v199 = vpop.f32.mrb[0].mxu0
    %v200 = vadd.f32 0.0, %v199
    %v201 = vpop.f32.mrb[0].mxu0
    %v202 = vpop.f32.mrb[0].mxu0
    %v203 = vadd.f32 0.0, %v202
    %v204 = vpop.f32.mrb[0].mxu0
    %205 = vmatprep.mubr.bf16.mxu0 0
    %206 = vmatmul.mubr.bf16.gmra.mrb[0].mxu0 %v83
    %v207 = vpop.f32.mrb[0].mxu0
    %v208 = vadd.f32 0.0, %v207
    %v209 = vpop.f32.mrb[0].mxu0
    %v210 = vpop.f32.mrb[0].mxu0
    %v211 = vadd.f32 0.0, %v210
    %v212 = vpop.f32.mrb[0].mxu0
    %213 = vmatprep.mubr.bf16.mxu0 0
    %214 = vmatmul.mubr.bf16.gmra.mrb[0].mxu0 %v84
    %v215 = vpop.f32.mrb[0].mxu0
    %v216 = vadd.f32 0.0, %v215
    %v217 = vpop.f32.mrb[0].mxu0
    %v218 = vpop.f32.mrb[0].mxu0
    %v219 = vadd.f32 0.0, %v218
    %v220 = vpop.f32.mrb[0].mxu0
    %221 = vdwg.mxu0
    %v222 = vadd.f32 %v109, %v160
    %v223 = vadd.f32 %v110, %v163
    %v224 = vadd.f32 %v111, %v168
    %v225 = vadd.f32 %v112, %v171
    %v226 = vadd.f32 %v113, %v176
    %v227 = vadd.f32 %v114, %v179
    %v228 = vadd.f32 %v115, %v184
    %v229 = vadd.f32 %v116, %v187
    %v230 = vadd.f32 %v117, %v192
    %v231 = vadd.f32 %v118, %v195
    %v232 = vadd.f32 %v119, %v200
    %v233 = vadd.f32 %v120, %v203
    %v234 = vadd.f32 %v121, %v208
    %v235 = vadd.f32 %v122, %v211
    %v236 = vadd.f32 %v123, %v216
    %v237 = vadd.f32 %v124, %v219
    %238 = vst [vmem:[#allocation2] sm:$0xff] %v222
    %239 = vst [vmem:[#allocation2 + $0x8] sm:$0xff] %v223
    %240 = vst [vmem:[#allocation2 + $0x10] sm:$0xff] %v224
    %241 = vst [vmem:[#allocation2 + $0x18] sm:$0xff] %v225
    %242 = vst [vmem:[#allocation2 + $0x20] sm:$0xff] %v226
    %243 = vst [vmem:[#allocation2 + $0x28] sm:$0xff] %v227
    %244 = vst [vmem:[#allocation2 + $0x30] sm:$0xff] %v228
    %245 = vst [vmem:[#allocation2 + $0x38] sm:$0xff] %v229
    %246 = vst [vmem:[#allocation2 + $0x40] sm:$0xff] %v230
    %247 = vst [vmem:[#allocation2 + $0x48] sm:$0xff] %v231
    %248 = vst [vmem:[#allocation2 + $0x50] sm:$0xff] %v232
    %249 = vst [vmem:[#allocation2 + $0x58] sm:$0xff] %v233
    %250 = vst [vmem:[#allocation2 + $0x60] sm:$0xff] %v234
    %251 = vst [vmem:[#allocation2 + $0x68] sm:$0xff] %v235
    %252 = vst [vmem:[#allocation2 + $0x70] sm:$0xff] %v236
    %253 = vst [vmem:[#allocation2 + $0x78] sm:$0xff] %v237
    // Predicated region
    $region22: #{tpu_custom_call.1} parent=1 // pred_check
      %p254 = pneg %p41
    $region23: #{tpu_custom_call.1} parent=1 // pred_check_branch
      %256 = sbr.rel (%p254) target = $region25
    $region24: #{tpu_custom_call.1} parent=1 // pred_region
      %v257 = vld [vmem:[#allocation2] sm:$0xff]
      %v258 = vld [vmem:[#allocation2 + $0x8] sm:$0xff]
      %v259 = vld [vmem:[#allocation2 + $0x10] sm:$0xff]
      %v260 = vld [vmem:[#allocation2 + $0x18] sm:$0xff]
      %v261 = vld [vmem:[#allocation2 + $0x20] sm:$0xff]
      %v262 = vld [vmem:[#allocation2 + $0x28] sm:$0xff]
      %v263 = vld [vmem:[#allocation2 + $0x30] sm:$0xff]
      %v264 = vld [vmem:[#allocation2 + $0x38] sm:$0xff]
      %v265 = vld [vmem:[#allocation2 + $0x40] sm:$0xff]
      %v266 = vld [vmem:[#allocation2 + $0x48] sm:$0xff]
      %v267 = vld [vmem:[#allocation2 + $0x50] sm:$0xff]
      %v268 = vld [vmem:[#allocation2 + $0x58] sm:$0xff]
      %v269 = vld [vmem:[#allocation2 + $0x60] sm:$0xff]
      %v270 = vld [vmem:[#allocation2 + $0x68] sm:$0xff]
      %v271 = vld [vmem:[#allocation2 + $0x70] sm:$0xff]
      %v272 = vld [vmem:[#allocation2 + $0x78] sm:$0xff]
      %v273 = vpack.c.bf16 %v258, %v257
      %v274 = vpack.c.bf16 %v260, %v259
      %v275 = vpack.c.bf16 %v262, %v261
      %v276 = vpack.c.bf16 %v264, %v263
      %v277 = vpack.c.bf16 %v266, %v265
      %v278 = vpack.c.bf16 %v268, %v267
      %v279 = vpack.c.bf16 %v270, %v269
      %v280 = vpack.c.bf16 %v272, %v271
      %v289 = vunpack.c.l.b16 %v273
      %v290 = vunpack.c.h.b16 %v273
      %v291 = vunpack.c.l.b16 %v274
      %v292 = vunpack.c.h.b16 %v274
      %v293 = vunpack.c.l.b16 %v275
      %v294 = vunpack.c.h.b16 %v275
      %v295 = vunpack.c.l.b16 %v276
      %v296 = vunpack.c.h.b16 %v276
      %v297 = vunpack.c.l.b16 %v277
      %v298 = vunpack.c.h.b16 %v277
      %v299 = vunpack.c.l.b16 %v278
      %v300 = vunpack.c.h.b16 %v278
      %v301 = vunpack.c.l.b16 %v279
      %v302 = vunpack.c.h.b16 %v279
      %v303 = vunpack.c.l.b16 %v280
      %v304 = vunpack.c.h.b16 %v280
      %v305 = vpack.c.b16 %v289, %v289
      %v306 = vpack.c.b16 %v290, %v290
      %v307 = vpack.c.b16 %v291, %v291
      %v308 = vpack.c.b16 %v292, %v292
      %v309 = vpack.c.b16 %v293, %v293
      %v310 = vpack.c.b16 %v294, %v294
      %v311 = vpack.c.b16 %v295, %v295
      %v312 = vpack.c.b16 %v296, %v296
      %v313 = vpack.c.b16 %v297, %v297
      %v314 = vpack.c.b16 %v298, %v298
      %v315 = vpack.c.b16 %v299, %v299
      %v316 = vpack.c.b16 %v300, %v300
      %v317 = vpack.c.b16 %v301, %v301
      %v318 = vpack.c.b16 %v302, %v302
      %v319 = vpack.c.b16 %v303, %v303
      %v320 = vpack.c.b16 %v304, %v304
      %337 = vst [vmem:[#allocation8] sm:$0xf] %v305
      %338 = vst [vmem:[#allocation8 + $0x4] sm:$0xf] %v306
      %339 = vst [vmem:[#allocation8 + $0x8] sm:$0xf] %v307
      %340 = vst [vmem:[#allocation8 + $0xc] sm:$0xf] %v308
      %341 = vst [vmem:[#allocation8 + $0x10] sm:$0xf] %v309
      %342 = vst [vmem:[#allocation8 + $0x14] sm:$0xf] %v310
      %343 = vst [vmem:[#allocation8 + $0x18] sm:$0xf] %v311
      %344 = vst [vmem:[#allocation8 + $0x1c] sm:$0xf] %v312
      %345 = vst [vmem:[#allocation8 + $0x20] sm:$0xf] %v313
      %346 = vst [vmem:[#allocation8 + $0x24] sm:$0xf] %v314
      %347 = vst [vmem:[#allocation8 + $0x28] sm:$0xf] %v315
      %348 = vst [vmem:[#allocation8 + $0x2c] sm:$0xf] %v316
      %349 = vst [vmem:[#allocation8 + $0x30] sm:$0xf] %v317
      %350 = vst [vmem:[#allocation8 + $0x34] sm:$0xf] %v318
      %351 = vst [vmem:[#allocation8 + $0x38] sm:$0xf] %v319
      %352 = vst [vmem:[#allocation8 + $0x3c] sm:$0xf] %v320
    $region25: #{tpu_custom_call.1} parent=1 // pred_fallthru
      _
    // Predicated region
    $region26: #{tpu_custom_call.1} parent=1 // pred_check
      _
    $region27: #{tpu_custom_call.1} parent=1 // pred_check_branch
      %354 = sbr.rel (0) target = $region29
    $region28: #{tpu_custom_call.1} parent=1 // pred_region
      %s356 = ssub.s32 1024, 1024
      %357 = vsyncadd [#allocation5], %s356
      %s358 = sshll.u32 [#allocation8], 4
      %s359 = int_to_ptr.vmem [resolvable:$true] %s358
      %364 = dma.vmem_to_hbm [thread:$0]  %s359, 1024, %s2, [#allocation5], 64, 64, 4
    $region29: #{tpu_custom_call.1} parent=1 // pred_fallthru
      _
    // Predicated region
    $region30: #{tpu_custom_call.1} parent=1 // pred_check
      _
    $region31: #{tpu_custom_call.1} parent=1 // pred_check_branch
      %366 = sbr.rel (0) target = $region33
    $region32: #{tpu_custom_call.1} parent=1 // pred_region
      %367 = dma.done [#allocation5], 1024
    $region33: #{tpu_custom_call.1} parent=1 // pred_fallthru
      _
    %368 = vsyncpa [#allocation4], 1
    %369 = vsyncpa [#allocation7], 1
    %370 = vsyncpa [#allocation5], 1

</llo_original>
